<compile_context>
chip_gen: v6e
topology: v6e:2x2x1
jax: 0.10.0
libtpu: 0.0.40
codegen_flags: <defaults>
</compile_context>

<pallas_src>
import jax
import jax.numpy as jnp
from jax.experimental import pallas as pl
from jax.experimental.pallas import tpu as pltpu

EPS = 1e-5          # BatchNorm1d default eps
LANES = 128         # vreg lane width
SUBLANES = 8        # vreg sublane count


def _cdiv(a, b):
    return -(-a // b)


def _round_up(n, m):
    return _cdiv(n, m) * m


def _vmem_budget_bytes():
    """Generation-aware VMEM budget (v5e/v6e 128 MiB, v7x 64 MiB) with headroom."""
    try:
        cap = int(pltpu.get_tpu_info().vmem_capacity_bytes)
    except Exception:
        cap = 64 << 20
    return max(32 << 20, (cap * 3) // 4)


def _fused_mlp_kernel(x_ref, w1_ref, b1_ref, w2_ref, b2_ref, out_ref):
    """out = ReLU(x @ W1 + b1) @ W2 + b2.

    x/W1/W2 arrive already in the compute dtype (bf16 by default, pre-cast in
    the wrapper); biases, ReLU and both accumulations are f32.
    """
    h = jnp.dot(x_ref[...], w1_ref[...], preferred_element_type=jnp.float32)
    h = jnp.maximum(h + b1_ref[...], 0.0)                       # f32 bias + ReLU
    out = jnp.dot(h.astype(w2_ref.dtype), w2_ref[...],
                  preferred_element_type=jnp.float32)
    out_ref[...] = (out + b2_ref[...]).astype(out_ref.dtype)
    # TODO(synk): Dropout(p=0.2) is identity in eval mode; training-mode dropout
    # mask and training-mode BatchNorm batch statistics are not emulated here.


def text_cnn_forward(x, params, *, batch_tile=1024, compute_dtype=jnp.bfloat16):
    """Folded forward pass. x: (B, n_inputs). Returns (B, n_out) f32.

    compute_dtype=jnp.bfloat16 (default) feeds the MXU at native rate on
    v5e/v6e/v7x; pass jnp.float32 for bit-faithful (up to fold rounding) math.
    """
    x = jnp.asarray(x)
    B, n_inputs = x.shape
    n_out = params["bfc"].shape[-1]

    # ---------------- wrapper-side algebraic folding (f32, trace-time) --------
    wc = jnp.concatenate(list(params["wc"]), axis=-1)        # (d_model, 4H)
    bc = jnp.concatenate(list(params["bc"]), axis=-1)        # (1, 4H)
    gamma = jnp.concatenate(list(params["gamma"]), axis=-1)
    beta = jnp.concatenate(list(params["beta"]), axis=-1)
    rm = jnp.concatenate(list(params["rm"]), axis=-1)
    rv = jnp.concatenate(list(params["rv"]), axis=-1)

    scale = gamma * jax.lax.rsqrt(rv + EPS)                  # fold BN (eval)
    w_conv = wc * scale
    b_conv = (bc - rm) * scale + beta

    w1 = params["wlin"] @ w_conv                             # (n_inputs, 4H)
    b1 = params["blin"] @ w_conv + b_conv                    # (1, 4H) f32
    h4 = w1.shape[1]

    # Lane-dense final layer: pad n_out up to 128 lanes (zeros), slice outside.
    n_out_p = max(LANES, _round_up(n_out, LANES))
    w2 = jnp.zeros((h4, n_out_p), jnp.float32).at[:, :n_out].set(params["wfc"])
    b2 = jnp.zeros((1, n_out_p), jnp.float32).at[:, :n_out].set(params["bfc"])

    # Pre-cast once in the wrapper: no per-grid-step casts inside the kernel.
    w1 = w1.astype(compute_dtype)
    w2 = w2.astype(compute_dtype)
    x = x.astype(compute_dtype)
    b1 = b1.astype(jnp.float32)
    b2 = b2.astype(jnp.float32)
    xbytes = jnp.dtype(compute_dtype).itemsize

    # ---------------- batch tiling (multiple of 8, minimal padding) -----------
    batch_tile = max(SUBLANES, (int(batch_tile) // SUBLANES) * SUBLANES)
    bp0 = _round_up(B, SUBLANES)
    n_tiles = _cdiv(bp0, batch_tile)
    if n_tiles == 1 and bp0 >= 2 * SUBLANES:
        n_tiles = 2        # give v7x's second TensorCore work; no-op on v5e/v6e
    tile = _round_up(_cdiv(bp0, n_tiles), SUBLANES)

    # ---------------- VMEM-aware sizing ---------------------------------------
    budget = _vmem_budget_bytes()
    w1_bytes = n_inputs * h4 * xbytes
    w2_bytes = h4 * n_out_p * xbytes
    big_weights = max(w1_bytes, w2_bytes) > (4 << 20)
    w_buf = 1 if big_weights else 2          # single-buffer large resident weights
    resident = w_buf * (w1_bytes + w2_bytes + (h4 + n_out_p) * 4)

    def step_bytes(t):                       # double-buffered x tile + f32 out tile
        return 2 * t * n_inputs * xbytes + 2 * t * n_out_p * 4

    while tile > SUBLANES and resident + step_bytes(tile) > budget:
        tile = max(SUBLANES, _round_up(tile // 2, SUBLANES))

    grid0 = _cdiv(bp0, tile)
    bp = grid0 * tile
    if bp != B:
        x = jnp.pad(x, ((0, bp - B), (0, 0)))

    vmem_limit = int(min(budget, max(32 << 20, (resident + step_bytes(tile)) * 3 // 2)))

    def const_spec(shape):
        if big_weights:
            return pl.BlockSpec(shape, lambda i: (0, 0), pipeline_mode=pl.Buffered(1))
        return pl.BlockSpec(shape, lambda i: (0, 0))

    out = pl.pallas_call(
        _fused_mlp_kernel,
        out_shape=jax.ShapeDtypeStruct((bp, n_out_p), jnp.float32),
        grid=(grid0,),
        in_specs=[
            pl.BlockSpec((tile, n_inputs), lambda i: (i, 0)),   # x (batch-tiled)
            const_spec((n_inputs, h4)),                         # W1 (resident)
            const_spec((1, h4)),                                # b1
            const_spec((h4, n_out_p)),                          # W2
            const_spec((1, n_out_p)),                           # b2
        ],
        out_specs=pl.BlockSpec((tile, n_out_p), lambda i: (i, 0)),
        compiler_params=pltpu.CompilerParams(
            dimension_semantics=("parallel",),                  # megacore / dual-TC
            vmem_limit_bytes=vmem_limit),
    )(x, w1, b1, w2, b2)

    return out[:B, :n_out]


def init_params(key, n_inputs, d_model, n_hidden, n_out):
    """Deterministic init mimicking the PyTorch module's shapes.

    Weights are stored pre-transposed: (in_features, out_features)."""
    ks = jax.random.split(key, 8)

    def uniform(k, shape, bound):
        return jax.random.uniform(k, shape, jnp.float32, -bound, bound)

    # linear: xavier_uniform_ weight, default uniform bias
    xav = (6.0 / (n_inputs + d_model)) ** 0.5
    wlin = uniform(ks[0], (n_inputs, d_model), xav)
    blin = uniform(ks[1], (1, d_model), 1.0 / (n_inputs ** 0.5))

    # conv1..4: kaiming_uniform_(relu) weight (fan_in = d_model), default bias
    kai = (6.0 / d_model) ** 0.5
    wc = uniform(ks[2], (4, d_model, n_hidden), kai)
    bc = uniform(ks[3], (4, 1, n_hidden), 1.0 / (d_model ** 0.5))

    # BatchNorm1d default init (eval mode, running stats)
    gamma = jnp.ones((4, 1, n_hidden), jnp.float32)
    beta = jnp.zeros((4, 1, n_hidden), jnp.float32)
    rm = jnp.zeros((4, 1, n_hidden), jnp.float32)
    rv = jnp.ones((4, 1, n_hidden), jnp.float32)

    # fc1: xavier_uniform_ weight, default uniform bias
    xav2 = (6.0 / (4 * n_hidden + n_out)) ** 0.5
    wfc = uniform(ks[4], (4 * n_hidden, n_out), xav2)
    bfc = uniform(ks[5], (1, n_out), 1.0 / ((4 * n_hidden) ** 0.5))

    return dict(wlin=wlin, blin=blin, wc=wc, bc=bc, gamma=gamma, beta=beta,
                rm=rm, rv=rv, wfc=wfc, bfc=bfc)


def _reference(x, params):
    """Pure-JAX f32 reference of the ORIGINAL (un-folded) eval-mode math."""
    h = x @ params["wlin"] + params["blin"]
    branches = []
    for i in range(4):
        z = h @ params["wc"][i] + params["bc"][i]
        y = (z - params["rm"][i]) * jax.lax.rsqrt(params["rv"][i] + EPS) \
            * params["gamma"][i] + params["beta"][i]
        branches.append(jnp.maximum(y, 0.0))
    return jnp.concatenate(branches, axis=-1) @ params["wfc"] + params["bfc"]


if __name__ == "__main__":
    # Small, module-consistent shapes
    B, n_inputs, d_model, n_hidden, n_out = 8, 16, 32, 32, 8

    key = jax.random.PRNGKey(0)
    kx, kp = jax.random.split(key)
    x = jax.random.normal(kx, (B, n_inputs), jnp.float32)
    params = init_params(kp, n_inputs, d_model, n_hidden, n_out)
    ref = _reference(x, params)

    # 1) f32 compute path: matches the un-folded reference up to fold rounding.
    out_f32 = jax.block_until_ready(
        text_cnn_forward(x, params, compute_dtype=jnp.float32))
    assert out_f32.shape == (B, n_out) and out_f32.dtype == jnp.float32
    assert jnp.allclose(out_f32, ref, atol=1e-4, rtol=1e-4), \
        float(jnp.max(jnp.abs(out_f32 - ref)))

    # 2) Default bf16 compute path (MXU-rate): loose tolerance vs f32 reference.
    out_bf16 = jax.block_until_ready(text_cnn_forward(x, params))
    assert out_bf16.shape == (B, n_out) and out_bf16.dtype == jnp.float32
    assert jnp.allclose(out_bf16, ref, atol=1e-1, rtol=1e-1), \
        float(jnp.max(jnp.abs(out_bf16 - ref)))

    # 3) Batch that exercises the multi-tile ("parallel") grid + row padding.
    B2 = 40
    x2 = jax.random.normal(jax.random.PRNGKey(1), (B2, n_inputs), jnp.float32)
    ref2 = _reference(x2, params)
    out2 = jax.block_until_ready(text_cnn_forward(x2, params))
    assert out2.shape == (B2, n_out)
    assert jnp.allclose(out2, ref2, atol=1e-1, rtol=1e-1), \
        float(jnp.max(jnp.abs(out2 - ref2)))

    print("KERNEL_OK")
</pallas_src>

<mosaic_0001>
module attributes {stable_mosaic.version = 11 : i64} {
  func.func @_fused_mlp_kernel(%arg0: i32, %arg1: memref<8x16xf32, #tpu.memory_space<vmem>>, %arg2: memref<16x128xf32, #tpu.memory_space<vmem>>, %arg3: memref<1x128xf32, #tpu.memory_space<vmem>>, %arg4: memref<128x128xf32, #tpu.memory_space<vmem>>, %arg5: memref<1x128xf32, #tpu.memory_space<vmem>>, %arg6: memref<8x128xf32, #tpu.memory_space<vmem>>) attributes {dimension_semantics = [#tpu.dimension_semantics<parallel>], iteration_bounds = array<i64: 1>, scalar_prefetch = 0 : i64, scratch_operands = 0 : i64, tpu.core_type = #tpu.core_type<tc>, window_params = [{transform_indices = @transform_0, window_bounds = array<i64: 8, 16>}, {pipeline_mode = #tpu.pipeline_mode<synchronous>, transform_indices = @transform_1, window_bounds = array<i64: 16, 128>}, {pipeline_mode = #tpu.pipeline_mode<synchronous>, transform_indices = @transform_2, window_bounds = array<i64: 1, 128>}, {pipeline_mode = #tpu.pipeline_mode<synchronous>, transform_indices = @transform_3, window_bounds = array<i64: 128, 128>}, {pipeline_mode = #tpu.pipeline_mode<synchronous>, transform_indices = @transform_4, window_bounds = array<i64: 1, 128>}, {transform_indices = @transform_5, window_bounds = array<i64: 8, 128>}]} {
    %c0 = arith.constant 0 : index
    %c0_0 = arith.constant 0 : index
    %0 = vector.load %arg1[%c0, %c0_0] : memref<8x16xf32, #tpu.memory_space<vmem>>, vector<8x16xf32>
    %c0_1 = arith.constant 0 : index
    %c0_2 = arith.constant 0 : index
    %1 = vector.load %arg2[%c0_1, %c0_2] : memref<16x128xf32, #tpu.memory_space<vmem>>, vector<16x128xf32>
    %cst = arith.constant dense<0.000000e+00> : vector<8x128xf32>
    %2 = tpu.matmul %0, %1, %cst {dimension_numbers = #tpu.dot_dimension_numbers<[1], [0], [0], [1], [0, 0, 1, 1], [], []>} : vector<8x16xf32>, vector<16x128xf32>, vector<8x128xf32> -> vector<8x128xf32>
    %c0_3 = arith.constant 0 : index
    %c0_4 = arith.constant 0 : index
    %3 = vector.load %arg3[%c0_3, %c0_4] : memref<1x128xf32, #tpu.memory_space<vmem>>, vector<1x128xf32>
    %4 = vector.broadcast %3 : vector<1x128xf32> to vector<8x128xf32>
    %5 = arith.addf %2, %4 : vector<8x128xf32>
    %cst_5 = arith.constant 0.000000e+00 : f32
    %6 = vector.broadcast %cst_5 : f32 to vector<8x128xf32>
    %7 = arith.maximumf %5, %6 : vector<8x128xf32>
    %c0_6 = arith.constant 0 : index
    %c0_7 = arith.constant 0 : index
    %8 = vector.load %arg4[%c0_6, %c0_7] : memref<128x128xf32, #tpu.memory_space<vmem>>, vector<128x128xf32>
    %cst_8 = arith.constant dense<0.000000e+00> : vector<8x128xf32>
    %9 = tpu.matmul %7, %8, %cst_8 {dimension_numbers = #tpu.dot_dimension_numbers<[1], [0], [0], [1], [0, 0, 1, 1], [], []>} : vector<8x128xf32>, vector<128x128xf32>, vector<8x128xf32> -> vector<8x128xf32>
    %c0_9 = arith.constant 0 : index
    %c0_10 = arith.constant 0 : index
    %10 = vector.load %arg5[%c0_9, %c0_10] : memref<1x128xf32, #tpu.memory_space<vmem>>, vector<1x128xf32>
    %11 = vector.broadcast %10 : vector<1x128xf32> to vector<8x128xf32>
    %12 = arith.addf %9, %11 : vector<8x128xf32>
    %c0_11 = arith.constant 0 : index
    %c0_12 = arith.constant 0 : index
    %13 = vector.load %arg6[%c0_11, %c0_12] : memref<8x128xf32, #tpu.memory_space<vmem>>, vector<8x128xf32>
    tpu.vector_store %arg6[%c0_11, %c0_12], %12 {strides = array<i32>} : memref<8x128xf32, #tpu.memory_space<vmem>>, vector<8x128xf32>,
    return
  }
  func.func @transform_0(%arg0: i32) -> (i32, i32) {
    %c0_i32 = arith.constant 0 : i32
    %c0_i32_0 = arith.constant 0 : i32
    return %arg0, %c0_i32 : i32, i32
  }
  func.func @transform_1(%arg0: i32) -> (i32, i32) {
    %c0_i32 = arith.constant 0 : i32
    %c0_i32_0 = arith.constant 0 : i32
    %c0_i32_1 = arith.constant 0 : i32
    return %c0_i32, %c0_i32_0 : i32, i32
  }
  func.func @transform_2(%arg0: i32) -> (i32, i32) {
    %c0_i32 = arith.constant 0 : i32
    %c0_i32_0 = arith.constant 0 : i32
    %c0_i32_1 = arith.constant 0 : i32
    return %c0_i32, %c0_i32_0 : i32, i32
  }
  func.func @transform_3(%arg0: i32) -> (i32, i32) {
    %c0_i32 = arith.constant 0 : i32
    %c0_i32_0 = arith.constant 0 : i32
    %c0_i32_1 = arith.constant 0 : i32
    return %c0_i32, %c0_i32_0 : i32, i32
  }
  func.func @transform_4(%arg0: i32) -> (i32, i32) {
    %c0_i32 = arith.constant 0 : i32
    %c0_i32_0 = arith.constant 0 : i32
    %c0_i32_1 = arith.constant 0 : i32
    return %c0_i32, %c0_i32_0 : i32, i32
  }
  func.func @transform_5(%arg0: i32) -> (i32, i32) {
    %c0_i32 = arith.constant 0 : i32
    %c0_i32_0 = arith.constant 0 : i32
    return %arg0, %c0_i32 : i32, i32
  }
}

</mosaic_0001>

<llo_original>
// kernel: tpu_custom_call.1
$region0: #{tpu_custom_call.1}
  #allocation0 [shape = 'u32[]', space=smem, size = 0x4, offset = 0x4, fixed_abs, tag = 'smem constant byte address 0x4 - core index']
  #allocation1 [shape = 'u32[144,128]{1,0:T(1,128)}', space=vmem, size = 0x12000, scoped, tag = 'internal scratch']
  %s0 = inlined_call_operand.hbm [shape: f32[8,16], index: 0, kind: input, shape index: {}]
  %s1 = inlined_call_operand.hbm [shape: f32[16,128], index: 1, kind: input, shape index: {}]
  %s2 = inlined_call_operand.vmem [shape: f32[1,128], index: 2, kind: input, shape index: {}]
  %s3 = inlined_call_operand.hbm [shape: f32[128,128], index: 3, kind: input, shape index: {}]
  %s4 = inlined_call_operand.vmem [shape: f32[1,128], index: 4, kind: input, shape index: {}]
  %s5 = inlined_call_operand.hbm [shape: f32[8,128], index: 5, kind: output, shape index: {}]
  %s6 = sld [smem:[#allocation0]]
  $region42: #{tpu_custom_call.1} parent=0
    _
  %s8 = ssub.s32 1, %s6
  %s9 = scalar_select 0, %s8, %s6
  $region1: #{tpu_custom_call.1} parent=0
    #allocation2 [shape = 'u8[4096]{0}', space=vmem, size = 0x1000, scoped, tag = 'input window, operand 0, single buffered']
    #allocation3 [shape = 's32[1]{0}', space=sflag, size = 0x4, scoped, tag = 'scoped memory for tpu_custom_call.1']
    #allocation4 [shape = 's32[1]{0}', space=sflag, size = 0x4, scoped, tag = 'scoped memory for tpu_custom_call.1']
    #allocation5 [shape = 'u8[8192]{0}', space=vmem, size = 0x2000, scoped, tag = 'input window, operand 1, single buffered']
    #allocation6 [shape = 's32[1]{0}', space=sflag, size = 0x4, scoped, tag = 'scoped memory for tpu_custom_call.1']
    #allocation7 [shape = 'u8[65536]{0}', space=vmem, size = 0x10000, scoped, tag = 'input window, operand 3, single buffered']
    #allocation8 [shape = 'u8[4096]{0}', space=vmem, size = 0x1000, scoped, tag = 'output window, operand 0, single buffered']
    %10 = vsyncpa [#allocation3], 0
    %11 = vsyncpa [#allocation6], 0
    %12 = vsyncpa [#allocation4], 0
    // Predicated region
    $region2: #{tpu_custom_call.1} parent=1 // pred_check
      _
    $region3: #{tpu_custom_call.1} parent=1 // pred_check_branch
      %14 = sbr.rel (0) target = $region5
    $region4: #{tpu_custom_call.1} parent=1 // pred_region
      %s16 = ssub.s32 128, 128
      %17 = vsyncadd [#allocation3], %s16
      %s19 = sshll.u32 [#allocation2], 4
      %s20 = int_to_ptr.vmem [resolvable:$true] %s19
      %22 = dma.hbm_to_vmem [thread:$0]  %s0, 128, %s20, [#allocation3]
    $region5: #{tpu_custom_call.1} parent=1 // pred_fallthru
      _
    // Predicated region
    $region6: #{tpu_custom_call.1} parent=1 // pred_check
      _
    $region7: #{tpu_custom_call.1} parent=1 // pred_check_branch
      %24 = sbr.rel (0) target = $region9
    $region8: #{tpu_custom_call.1} parent=1 // pred_region
      %s26 = ssub.s32 256, 256
      %27 = vsyncadd [#allocation6], %s26
      %s28 = sshll.u32 [#allocation5], 4
      %s29 = int_to_ptr.vmem [resolvable:$true] %s28
      %34 = dma.hbm_to_vmem [thread:$0]  %s1, 256, %s29, [#allocation6], 128, 128, 8
    $region9: #{tpu_custom_call.1} parent=1 // pred_fallthru
      _
    // Predicated region
    $region10: #{tpu_custom_call.1} parent=1 // pred_check
      _
    $region11: #{tpu_custom_call.1} parent=1 // pred_check_branch
      %36 = sbr.rel (0) target = $region13
    $region12: #{tpu_custom_call.1} parent=1 // pred_region
      _
    $region13: #{tpu_custom_call.1} parent=1 // pred_fallthru
      _
    // Predicated region
    $region14: #{tpu_custom_call.1} parent=1 // pred_check
      _
    $region15: #{tpu_custom_call.1} parent=1 // pred_check_branch
      %38 = sbr.rel (0) target = $region17
    $region16: #{tpu_custom_call.1} parent=1 // pred_region
      %s40 = ssub.s32 2048, 2048
      %41 = vsyncadd [#allocation6], %s40
      %s42 = sshll.u32 [#allocation7], 4
      %s43 = int_to_ptr.vmem [resolvable:$true] %s42
      %48 = dma.hbm_to_vmem [thread:$0]  %s3, 2048, %s43, [#allocation6], 128, 128, 8
    $region17: #{tpu_custom_call.1} parent=1 // pred_fallthru
      _
    // Predicated region
    $region18: #{tpu_custom_call.1} parent=1 // pred_check
      _
    $region19: #{tpu_custom_call.1} parent=1 // pred_check_branch
      %50 = sbr.rel (0) target = $region21
    $region20: #{tpu_custom_call.1} parent=1 // pred_region
      _
    $region21: #{tpu_custom_call.1} parent=1 // pred_fallthru
      _
    // Predicated region
    $region22: #{tpu_custom_call.1} parent=1 // pred_check
      _
    $region23: #{tpu_custom_call.1} parent=1 // pred_check_branch
      %52 = sbr.rel (0) target = $region25
    $region24: #{tpu_custom_call.1} parent=1 // pred_region
      %53 = dma.done [#allocation3], 128
    $region25: #{tpu_custom_call.1} parent=1 // pred_fallthru
      _
    // Predicated region
    $region26: #{tpu_custom_call.1} parent=1 // pred_check
      _
    $region27: #{tpu_custom_call.1} parent=1 // pred_check_branch
      %55 = sbr.rel (0) target = $region29
    $region28: #{tpu_custom_call.1} parent=1 // pred_region
      %56 = dma.done [#allocation6], 256
    $region29: #{tpu_custom_call.1} parent=1 // pred_fallthru
      _
    // Predicated region
    $region30: #{tpu_custom_call.1} parent=1 // pred_check
      _
    $region31: #{tpu_custom_call.1} parent=1 // pred_check_branch
      %58 = sbr.rel (0) target = $region33
    $region32: #{tpu_custom_call.1} parent=1 // pred_region
      %59 = dma.done [#allocation6], 2048
    $region33: #{tpu_custom_call.1} parent=1 // pred_fallthru
      _
    %v60 = vld [vmem:[#allocation2] sm:$0xff]
    %v61 = vld [vmem:[#allocation5] sm:$0xff]
    %v62 = vld [vmem:[#allocation5 + $0x8] sm:$0xff]
    %v63 = vld [vmem:[%s2] sm:$0x1]
    %v65 = vlaneseq
    %v66 = vshrl.u32 %v65, 7
    %v67 = vsub.s32 0, %v66
    %v68 = vrot.slane %v63, %v67
    %vm70 = vcmask 130048
    %v72 = vsel %vm70, %v60, 0
    %74 = vmatprep.subr.mxu0 0.0
    %75 = vmatpush1.msra.mxu0 0.0
    %76 = vmatprep.subr.mxu0 0.0
    %77 = vmatpush1.msra.mxu0 0.0
    %78 = vmatprep.subr.mxu0 0.0
    %79 = vmatpush1.msra.mxu0 0.0
    %80 = vmatprep.subr.mxu0 0.0
    %81 = vmatpush1.msra.mxu0 0.0
    %82 = vmatprep.subr.mxu0 0.0
    %83 = vmatpush1.msra.mxu0 0.0
    %84 = vmatprep.subr.mxu0 0.0
    %85 = vmatpush1.msra.mxu0 0.0
    %86 = vmatprep.subr.mxu0 0.0
    %87 = vmatpush1.msra.mxu0 0.0
    %88 = vmatprep.subr.mxu0 0.0
    %89 = vmatpush1.msra.mxu0 0.0
    %90 = vmatprep.subr.mxu0 0.0
    %91 = vmatpush1.msra.mxu0 0.0
    %92 = vmatprep.subr.mxu0 0.0
    %93 = vmatpush1.msra.mxu0 0.0
    %94 = vmatprep.subr.mxu0 0.0
    %95 = vmatpush1.msra.mxu0 0.0
    %96 = vmatprep.subr.mxu0 0.0
    %97 = vmatpush1.msra.mxu0 0.0
    %98 = vmatprep.subr.mxu0 0.0
    %99 = vmatpush1.msra.mxu0 0.0
    %100 = vmatprep.subr.mxu0 0.0
    %101 = vmatpush1.msra.mxu0 0.0
    %102 = vmatprep.subr.mxu0 0.0
    %103 = vmatpush1.msra.mxu0 %v62
    %104 = vmatprep.subr.mxu0 0.0
    %105 = vmatpush1.msra.mxu0 %v61
    %106 = vmatprep.subr.mxu0 0.0
    %107 = vmatpush2.msra.mxu0 0.0
    %108 = vmatprep.subr.mxu0 0.0
    %109 = vmatpush2.msra.mxu0 0.0
    %110 = vmatprep.subr.mxu0 0.0
    %111 = vmatpush2.msra.mxu0 0.0
    %112 = vmatprep.subr.mxu0 0.0
    %113 = vmatpush2.msra.mxu0 0.0
    %114 = vmatprep.subr.mxu0 0.0
    %115 = vmatpush2.msra.mxu0 0.0
    %116 = vmatprep.subr.mxu0 0.0
    %117 = vmatpush2.msra.mxu0 0.0
    %118 = vmatprep.subr.mxu0 0.0
    %119 = vmatpush2.msra.mxu0 0.0
    %120 = vmatprep.subr.mxu0 0.0
    %121 = vmatpush2.msra.mxu0 0.0
    %122 = vmatprep.subr.mxu0 0.0
    %123 = vmatpush2.msra.mxu0 0.0
    %124 = vmatprep.subr.mxu0 0.0
    %125 = vmatpush2.msra.mxu0 0.0
    %126 = vmatprep.subr.mxu0 0.0
    %127 = vmatpush2.msra.mxu0 0.0
    %128 = vmatprep.subr.mxu0 0.0
    %129 = vmatpush2.msra.mxu0 0.0
    %130 = vmatprep.subr.mxu0 0.0
    %131 = vmatpush2.msra.mxu0 0.0
    %132 = vmatprep.subr.mxu0 0.0
    %133 = vmatpush2.msra.mxu0 0.0
    %134 = vmatprep.subr.mxu0 0.0
    %135 = vmatpush2.msra.mxu0 0.0
    %136 = vmatprep.subr.mxu0 0.0
    %137 = vmatpush2.msra.mxu0 0.0
    %138 = vmatprep.mubr.f32.mxu0 0.0
    %139 = vmatmul.mubr.f32.gmra.mxu0 %v72
    %v140 = vpop.f32.mrf.mxu0
    %v141 = vadd.f32 %v68, %v140
    %v142 = vpop.f32.mrf.mxu0
    %143 = vdwg.mxu0
    %v144 = vmax.f32 %v141, 0.0
    %v145 = vld [vmem:[#allocation7] sm:$0xff]
    %v146 = vld [vmem:[#allocation7 + $0x8] sm:$0xff]
    %v147 = vld [vmem:[#allocation7 + $0x10] sm:$0xff]
    %v148 = vld [vmem:[#allocation7 + $0x18] sm:$0xff]
    %v149 = vld [vmem:[#allocation7 + $0x20] sm:$0xff]
    %v150 = vld [vmem:[#allocation7 + $0x28] sm:$0xff]
    %v151 = vld [vmem:[#allocation7 + $0x30] sm:$0xff]
    %v152 = vld [vmem:[#allocation7 + $0x38] sm:$0xff]
    %v153 = vld [vmem:[#allocation7 + $0x40] sm:$0xff]
    %v154 = vld [vmem:[#allocation7 + $0x48] sm:$0xff]
    %v155 = vld [vmem:[#allocation7 + $0x50] sm:$0xff]
    %v156 = vld [vmem:[#allocation7 + $0x58] sm:$0xff]
    %v157 = vld [vmem:[#allocation7 + $0x60] sm:$0xff]
    %v158 = vld [vmem:[#allocation7 + $0x68] sm:$0xff]
    %v159 = vld [vmem:[#allocation7 + $0x70] sm:$0xff]
    %v160 = vld [vmem:[#allocation7 + $0x78] sm:$0xff]
    %v161 = vld [vmem:[%s4] sm:$0x1]
    %v163 = vlaneseq
    %v164 = vshrl.u32 %v163, 7
    %v165 = vsub.s32 0, %v164
    %v166 = vrot.slane %v161, %v165
    %168 = vmatprep.subr.mxu0 0.0
    %169 = vmatpush1.msra.mxu0 %v160
    %170 = vmatprep.subr.mxu0 0.0
    %171 = vmatpush1.msra.mxu0 %v159
    %172 = vmatprep.subr.mxu0 0.0
    %173 = vmatpush1.msra.mxu0 %v158
    %174 = vmatprep.subr.mxu0 0.0
    %175 = vmatpush1.msra.mxu0 %v157
    %176 = vmatprep.subr.mxu0 0.0
    %177 = vmatpush1.msra.mxu0 %v156
    %178 = vmatprep.subr.mxu0 0.0
    %179 = vmatpush1.msra.mxu0 %v155
    %180 = vmatprep.subr.mxu0 0.0
    %181 = vmatpush1.msra.mxu0 %v154
    %182 = vmatprep.subr.mxu0 0.0
    %183 = vmatpush1.msra.mxu0 %v153
    %184 = vmatprep.subr.mxu0 0.0
    %185 = vmatpush1.msra.mxu0 %v152
    %186 = vmatprep.subr.mxu0 0.0
    %187 = vmatpush1.msra.mxu0 %v151
    %188 = vmatprep.subr.mxu0 0.0
    %189 = vmatpush1.msra.mxu0 %v150
    %190 = vmatprep.subr.mxu0 0.0
    %191 = vmatpush1.msra.mxu0 %v149
    %192 = vmatprep.subr.mxu0 0.0
    %193 = vmatpush1.msra.mxu0 %v148
    %194 = vmatprep.subr.mxu0 0.0
    %195 = vmatpush1.msra.mxu0 %v147
    %196 = vmatprep.subr.mxu0 0.0
    %197 = vmatpush1.msra.mxu0 %v146
    %198 = vmatprep.subr.mxu0 0.0
    %199 = vmatpush1.msra.mxu0 %v145
    %200 = vmatprep.subr.mxu0 0.0
    %201 = vmatpush2.msra.mxu0 0.0
    %202 = vmatprep.subr.mxu0 0.0
    %203 = vmatpush2.msra.mxu0 0.0
    %204 = vmatprep.subr.mxu0 0.0
    %205 = vmatpush2.msra.mxu0 0.0
    %206 = vmatprep.subr.mxu0 0.0
    %207 = vmatpush2.msra.mxu0 0.0
    %208 = vmatprep.subr.mxu0 0.0
    %209 = vmatpush2.msra.mxu0 0.0
    %210 = vmatprep.subr.mxu0 0.0
    %211 = vmatpush2.msra.mxu0 0.0
    %212 = vmatprep.subr.mxu0 0.0
    %213 = vmatpush2.msra.mxu0 0.0
    %214 = vmatprep.subr.mxu0 0.0
    %215 = vmatpush2.msra.mxu0 0.0
    %216 = vmatprep.subr.mxu0 0.0
    %217 = vmatpush2.msra.mxu0 0.0
    %218 = vmatprep.subr.mxu0 0.0
    %219 = vmatpush2.msra.mxu0 0.0
    %220 = vmatprep.subr.mxu0 0.0
    %221 = vmatpush2.msra.mxu0 0.0
    %222 = vmatprep.subr.mxu0 0.0
    %223 = vmatpush2.msra.mxu0 0.0
    %224 = vmatprep.subr.mxu0 0.0
    %225 = vmatpush2.msra.mxu0 0.0
    %226 = vmatprep.subr.mxu0 0.0
    %227 = vmatpush2.msra.mxu0 0.0
    %228 = vmatprep.subr.mxu0 0.0
    %229 = vmatpush2.msra.mxu0 0.0
    %230 = vmatprep.subr.mxu0 0.0
    %231 = vmatpush2.msra.mxu0 0.0
    %232 = vmatprep.mubr.f32.mxu0 0.0
    %233 = vmatmul.mubr.f32.gmra.mxu0 %v144
    %v234 = vpop.f32.mrf.mxu0
    %v235 = vadd.f32 %v166, %v234
    %v236 = vpop.f32.mrf.mxu0
    %237 = vdwg.mxu0
    %238 = vst [vmem:[#allocation8] sm:$0xff] %v235
    // Predicated region
    $region34: #{tpu_custom_call.1} parent=1 // pred_check
      _
    $region35: #{tpu_custom_call.1} parent=1 // pred_check_branch
      %240 = sbr.rel (0) target = $region37
    $region36: #{tpu_custom_call.1} parent=1 // pred_region
      %s242 = ssub.s32 128, 128
      %243 = vsyncadd [#allocation4], %s242
      %s245 = sshll.u32 [#allocation8], 4
      %s246 = int_to_ptr.vmem [resolvable:$true] %s245
      %248 = dma.vmem_to_hbm [thread:$0]  %s246, 128, %s5, [#allocation4]
    $region37: #{tpu_custom_call.1} parent=1 // pred_fallthru
      _
    // Predicated region
    $region38: #{tpu_custom_call.1} parent=1 // pred_check
      _
    $region39: #{tpu_custom_call.1} parent=1 // pred_check_branch
      %250 = sbr.rel (0) target = $region41
    $region40: #{tpu_custom_call.1} parent=1 // pred_region
      %251 = dma.done [#allocation4], 128
    $region41: #{tpu_custom_call.1} parent=1 // pred_fallthru
      _
    %252 = vsyncpa [#allocation3], 1
    %253 = vsyncpa [#allocation6], 1
    %254 = vsyncpa [#allocation4], 1

</llo_original>
